<compile_context>
chip_gen: v5e
topology: v5e:2x2
jax: 0.10.0
libtpu: 0.0.40
codegen_flags: <defaults>
</compile_context>

<pallas_src>
import jax
import jax.numpy as jnp
from jax.experimental import pallas as pl
from jax.experimental.pallas import tpu as pltpu

EMB_DIM = 384
CATEGORY_CLASSES = 7
ACTION_CLASSES = 3
HEAD_OUT = CATEGORY_CLASSES + ACTION_CLASSES  # 10

_H1 = 192
_H2 = 96
_H3 = 48
_LH = 128   # lane-dense output width (cols 0..6 category, 7..9 action, rest 0)

# (in_features, out_features) for every Linear of the original module.
_COMMON_DIMS = [(EMB_DIM, _H1), (_H1, _H2), (_H2, _H3)]
_CAT_DIMS = [(_H3, 24), (24, 12), (12, CATEGORY_CLASSES)]
_ACT_DIMS = [(_H3, 24), (24, 12), (12, ACTION_CLASSES)]


def _mail_classifier_kernel(x_ref, w1_ref, b1_ref, w2_ref, b2_ref,
                            w3_ref, b3_ref, wh_ref, bh_ref, out_ref):
    # x: (TILE_B, 384) bf16.  Weights bf16, biases f32.
    x = x_ref[...]

    # Common trunk: Linear -> ReLU, three times.  MXU in bf16, f32 accumulate;
    # bias-add / ReLU on the VPU in f32; cast back to bf16 before the next dot.
    h = jnp.dot(x, w1_ref[...], preferred_element_type=jnp.float32)
    h = jnp.maximum(h + b1_ref[...], 0.0)                     # (TILE_B, 192) f32

    h = jnp.dot(h.astype(jnp.bfloat16), w2_ref[...],
                preferred_element_type=jnp.float32)
    h = jnp.maximum(h + b2_ref[...], 0.0)                     # (TILE_B, 96) f32

    h = jnp.dot(h.astype(jnp.bfloat16), w3_ref[...],
                preferred_element_type=jnp.float32)
    h = jnp.maximum(h + b3_ref[...], 0.0)                     # (TILE_B, 48) f32

    # Folded category+action heads: single affine map, lane-dense (128) store.
    out = jnp.dot(h.astype(jnp.bfloat16), wh_ref[...],
                  preferred_element_type=jnp.float32) + bh_ref[...]
    out_ref[...] = out.astype(out_ref.dtype)                  # (TILE_B, 128)


def init_params(key):
    """Deterministic per-layer params mimicking torch.nn.Linear's
    U(-1/sqrt(fan_in), 1/sqrt(fan_in)) init.  Weights stored as
    (in_features, out_features); biases as (1, out_features); all float32."""
    params = []
    for (fan_in, fan_out) in _COMMON_DIMS + _CAT_DIMS + _ACT_DIMS:
        key, kw, kb = jax.random.split(key, 3)
        bound = 1.0 / jnp.sqrt(jnp.float32(fan_in))
        w = jax.random.uniform(kw, (fan_in, fan_out), jnp.float32, -bound, bound)
        b = jax.random.uniform(kb, (1, fan_out), jnp.float32, -bound, bound)
        params.append((w, b))
    return params


def _hdot(a, b):
    # Exact-as-possible f32 matmul for the offline head folding.
    return jnp.dot(a, b, precision=jax.lax.Precision.HIGHEST)


def pack_params(params):
    """Fold the activation-free heads into one (48, 10) affine map and emit
    kernel-ready arrays: bf16 weights at natural shapes, f32 biases.  The head
    weight/bias are lane-padded to 128 so the kernel output is lane-dense
    (zero-padded lanes stay exactly 0)."""
    (w1, b1), (w2, b2), (w3, b3) = params[0:3]
    (cw1, cb1), (cw2, cb2), (cw3, cb3) = params[3:6]
    (aw1, ab1), (aw2, ab2), (aw3, ab3) = params[6:9]

    # Head folding: three Linears with no activation == one affine map.
    w_cat = _hdot(_hdot(cw1, cw2), cw3)                           # (48, 7)
    b_cat = _hdot(_hdot(cb1, cw2) + cb2, cw3) + cb3               # (1, 7)
    w_act = _hdot(_hdot(aw1, aw2), aw3)                           # (48, 3)
    b_act = _hdot(_hdot(ab1, aw2) + ab2, aw3) + ab3               # (1, 3)
    w_heads = jnp.concatenate([w_cat, w_act], axis=1)             # (48, 10)
    b_heads = jnp.concatenate([b_cat, b_act], axis=1)             # (1, 10)

    wh = jnp.zeros((_H3, _LH), jnp.float32).at[:, :HEAD_OUT].set(w_heads)
    bh = jnp.zeros((1, _LH), jnp.float32).at[:, :HEAD_OUT].set(b_heads)

    return (w1.astype(jnp.bfloat16), b1.astype(jnp.float32),
            w2.astype(jnp.bfloat16), b2.astype(jnp.float32),
            w3.astype(jnp.bfloat16), b3.astype(jnp.float32),
            wh.astype(jnp.bfloat16), bh.astype(jnp.float32))


def _round_up(x, m):
    return ((x + m - 1) // m) * m


def mail_classifier_forward(embeddings, packed, *, tile_b=256):
    """embeddings: (B, 384) float32 sentence embeddings.
    packed: output of pack_params().
    Returns (category_logits (B, 7), action_logits (B, 3)) in float32.

    tile_b: batch tile.  256 fills the v6e/v7x MXU; use 128 on v5e.  It is
    capped to the (sublane-rounded) batch, so tiny calls stay gridless."""
    w1, b1, w2, b2, w3, b3, wh, bh = packed
    B = embeddings.shape[0]
    tile_b = min(tile_b, _round_up(B, 8))
    grid = (pl.cdiv(B, tile_b),)

    x = embeddings.astype(jnp.bfloat16)   # halves the activation DMA bytes

    _fixed = lambda i: (0, 0)             # weights/biases: VMEM-resident across the grid
    out = pl.pallas_call(
        _mail_classifier_kernel,
        out_shape=jax.ShapeDtypeStruct((B, _LH), jnp.float32),
        grid_spec=pltpu.PrefetchScalarGridSpec(
            num_scalar_prefetch=0,
            grid=grid,
            in_specs=[
                pl.BlockSpec((tile_b, EMB_DIM), lambda i: (i, 0)),   # x
                pl.BlockSpec((EMB_DIM, _H1), _fixed),                # W1
                pl.BlockSpec((1, _H1), _fixed),                      # b1
                pl.BlockSpec((_H1, _H2), _fixed),                    # W2
                pl.BlockSpec((1, _H2), _fixed),                      # b2
                pl.BlockSpec((_H2, _H3), _fixed),                    # W3
                pl.BlockSpec((1, _H3), _fixed),                      # b3
                pl.BlockSpec((_H3, _LH), _fixed),                    # folded heads W
                pl.BlockSpec((1, _LH), _fixed),                      # folded heads b
            ],
            out_specs=pl.BlockSpec((tile_b, _LH), lambda i: (i, 0)),
        ),
        compiler_params=pltpu.CompilerParams(
            dimension_semantics=("parallel",)),   # shards batch tiles across v7x's 2 TCs
    )(x, w1, b1, w2, b2, w3, b3, wh, bh)

    category_logits = out[:, :CATEGORY_CLASSES]
    action_logits = out[:, CATEGORY_CLASSES:HEAD_OUT]
    return category_logits, action_logits


def _reference_forward(embeddings, params):
    """Pure-JAX f32 reference matching the PyTorch forward (sequential layers)."""
    (w1, b1), (w2, b2), (w3, b3) = params[0:3]
    (cw1, cb1), (cw2, cb2), (cw3, cb3) = params[3:6]
    (aw1, ab1), (aw2, ab2), (aw3, ab3) = params[6:9]
    h = jnp.maximum(embeddings @ w1 + b1, 0.0)
    h = jnp.maximum(h @ w2 + b2, 0.0)
    h = jnp.maximum(h @ w3 + b3, 0.0)
    c = ((h @ cw1 + cb1) @ cw2 + cb2) @ cw3 + cb3
    a = ((h @ aw1 + ab1) @ aw2 + ab2) @ aw3 + ab3
    return c, a


if __name__ == "__main__":
    key = jax.random.PRNGKey(0)
    key_params, key_x = jax.random.split(key)

    batch = 8
    embeddings = jax.random.normal(key_x, (batch, EMB_DIM), jnp.float32)

    params = init_params(key_params)
    packed = pack_params(params)

    cat_logits, act_logits = mail_classifier_forward(embeddings, packed)
    jax.block_until_ready((cat_logits, act_logits))

    ref_cat, ref_act = _reference_forward(embeddings, params)
    assert cat_logits.shape == (batch, CATEGORY_CLASSES)
    assert act_logits.shape == (batch, ACTION_CLASSES)
    # bf16 weights/activations in the kernel vs. pure-f32 reference -> ~1e-3
    # absolute drift on O(0.1) logits; 2e-2 tolerance is comfortably loose.
    assert jnp.allclose(cat_logits, ref_cat, atol=2e-2, rtol=2e-2)
    assert jnp.allclose(act_logits, ref_act, atol=2e-2, rtol=2e-2)

    print("KERNEL_OK")
</pallas_src>

<mosaic_0001>
module attributes {stable_mosaic.version = 11 : i64} {
  func.func @_mail_classifier_kernel(%arg0: i32, %arg1: memref<8x384xbf16, #tpu.memory_space<vmem>>, %arg2: memref<384x192xbf16, #tpu.memory_space<vmem>>, %arg3: memref<1x192xf32, #tpu.memory_space<vmem>>, %arg4: memref<192x96xbf16, #tpu.memory_space<vmem>>, %arg5: memref<1x96xf32, #tpu.memory_space<vmem>>, %arg6: memref<96x48xbf16, #tpu.memory_space<vmem>>, %arg7: memref<1x48xf32, #tpu.memory_space<vmem>>, %arg8: memref<48x128xbf16, #tpu.memory_space<vmem>>, %arg9: memref<1x128xf32, #tpu.memory_space<vmem>>, %arg10: memref<8x128xf32, #tpu.memory_space<vmem>>) attributes {dimension_semantics = [#tpu.dimension_semantics<parallel>], iteration_bounds = array<i64: 1>, scalar_prefetch = 0 : i64, scratch_operands = 0 : i64, tpu.core_type = #tpu.core_type<tc>, window_params = [{transform_indices = @transform_0, window_bounds = array<i64: 8, 384>}, {pipeline_mode = #tpu.pipeline_mode<synchronous>, transform_indices = @transform_1, window_bounds = array<i64: 384, 192>}, {pipeline_mode = #tpu.pipeline_mode<synchronous>, transform_indices = @transform_2, window_bounds = array<i64: 1, 192>}, {pipeline_mode = #tpu.pipeline_mode<synchronous>, transform_indices = @transform_3, window_bounds = array<i64: 192, 96>}, {pipeline_mode = #tpu.pipeline_mode<synchronous>, transform_indices = @transform_4, window_bounds = array<i64: 1, 96>}, {pipeline_mode = #tpu.pipeline_mode<synchronous>, transform_indices = @transform_5, window_bounds = array<i64: 96, 48>}, {pipeline_mode = #tpu.pipeline_mode<synchronous>, transform_indices = @transform_6, window_bounds = array<i64: 1, 48>}, {pipeline_mode = #tpu.pipeline_mode<synchronous>, transform_indices = @transform_7, window_bounds = array<i64: 48, 128>}, {pipeline_mode = #tpu.pipeline_mode<synchronous>, transform_indices = @transform_8, window_bounds = array<i64: 1, 128>}, {transform_indices = @transform_9, window_bounds = array<i64: 8, 128>}]} {
    %c0 = arith.constant 0 : index
    %c0_0 = arith.constant 0 : index
    %0 = vector.load %arg1[%c0, %c0_0] : memref<8x384xbf16, #tpu.memory_space<vmem>>, vector<8x384xbf16>
    %c0_1 = arith.constant 0 : index
    %c0_2 = arith.constant 0 : index
    %1 = vector.load %arg2[%c0_1, %c0_2] : memref<384x192xbf16, #tpu.memory_space<vmem>>, vector<384x192xbf16>
    %cst = arith.constant dense<0.000000e+00> : vector<8x192xf32>
    %2 = tpu.matmul %0, %1, %cst {dimension_numbers = #tpu.dot_dimension_numbers<[1], [0], [0], [1], [0, 0, 1, 1], [], []>} : vector<8x384xbf16>, vector<384x192xbf16>, vector<8x192xf32> -> vector<8x192xf32>
    %c0_3 = arith.constant 0 : index
    %c0_4 = arith.constant 0 : index
    %3 = vector.load %arg3[%c0_3, %c0_4] : memref<1x192xf32, #tpu.memory_space<vmem>>, vector<1x192xf32>
    %4 = vector.broadcast %3 : vector<1x192xf32> to vector<8x192xf32>
    %5 = arith.addf %2, %4 : vector<8x192xf32>
    %cst_5 = arith.constant 0.000000e+00 : f32
    %6 = vector.broadcast %cst_5 : f32 to vector<8x192xf32>
    %7 = arith.maximumf %5, %6 : vector<8x192xf32>
    %8 = arith.truncf %7 : vector<8x192xf32> to vector<8x192xbf16>
    %c0_6 = arith.constant 0 : index
    %c0_7 = arith.constant 0 : index
    %9 = vector.load %arg4[%c0_6, %c0_7] : memref<192x96xbf16, #tpu.memory_space<vmem>>, vector<192x96xbf16>
    %cst_8 = arith.constant dense<0.000000e+00> : vector<8x96xf32>
    %10 = tpu.matmul %8, %9, %cst_8 {dimension_numbers = #tpu.dot_dimension_numbers<[1], [0], [0], [1], [0, 0, 1, 1], [], []>} : vector<8x192xbf16>, vector<192x96xbf16>, vector<8x96xf32> -> vector<8x96xf32>
    %c0_9 = arith.constant 0 : index
    %c0_10 = arith.constant 0 : index
    %11 = vector.load %arg5[%c0_9, %c0_10] : memref<1x96xf32, #tpu.memory_space<vmem>>, vector<1x96xf32>
    %12 = vector.broadcast %11 : vector<1x96xf32> to vector<8x96xf32>
    %13 = arith.addf %10, %12 : vector<8x96xf32>
    %cst_11 = arith.constant 0.000000e+00 : f32
    %14 = vector.broadcast %cst_11 : f32 to vector<8x96xf32>
    %15 = arith.maximumf %13, %14 : vector<8x96xf32>
    %16 = arith.truncf %15 : vector<8x96xf32> to vector<8x96xbf16>
    %c0_12 = arith.constant 0 : index
    %c0_13 = arith.constant 0 : index
    %17 = vector.load %arg6[%c0_12, %c0_13] : memref<96x48xbf16, #tpu.memory_space<vmem>>, vector<96x48xbf16>
    %cst_14 = arith.constant dense<0.000000e+00> : vector<8x48xf32>
    %18 = tpu.matmul %16, %17, %cst_14 {dimension_numbers = #tpu.dot_dimension_numbers<[1], [0], [0], [1], [0, 0, 1, 1], [], []>} : vector<8x96xbf16>, vector<96x48xbf16>, vector<8x48xf32> -> vector<8x48xf32>
    %c0_15 = arith.constant 0 : index
    %c0_16 = arith.constant 0 : index
    %19 = vector.load %arg7[%c0_15, %c0_16] : memref<1x48xf32, #tpu.memory_space<vmem>>, vector<1x48xf32>
    %20 = vector.broadcast %19 : vector<1x48xf32> to vector<8x48xf32>
    %21 = arith.addf %18, %20 : vector<8x48xf32>
    %cst_17 = arith.constant 0.000000e+00 : f32
    %22 = vector.broadcast %cst_17 : f32 to vector<8x48xf32>
    %23 = arith.maximumf %21, %22 : vector<8x48xf32>
    %24 = arith.truncf %23 : vector<8x48xf32> to vector<8x48xbf16>
    %c0_18 = arith.constant 0 : index
    %c0_19 = arith.constant 0 : index
    %25 = vector.load %arg8[%c0_18, %c0_19] : memref<48x128xbf16, #tpu.memory_space<vmem>>, vector<48x128xbf16>
    %cst_20 = arith.constant dense<0.000000e+00> : vector<8x128xf32>
    %26 = tpu.matmul %24, %25, %cst_20 {dimension_numbers = #tpu.dot_dimension_numbers<[1], [0], [0], [1], [0, 0, 1, 1], [], []>} : vector<8x48xbf16>, vector<48x128xbf16>, vector<8x128xf32> -> vector<8x128xf32>
    %c0_21 = arith.constant 0 : index
    %c0_22 = arith.constant 0 : index
    %27 = vector.load %arg9[%c0_21, %c0_22] : memref<1x128xf32, #tpu.memory_space<vmem>>, vector<1x128xf32>
    %28 = vector.broadcast %27 : vector<1x128xf32> to vector<8x128xf32>
    %29 = arith.addf %26, %28 : vector<8x128xf32>
    %c0_23 = arith.constant 0 : index
    %c0_24 = arith.constant 0 : index
    %30 = vector.load %arg10[%c0_23, %c0_24] : memref<8x128xf32, #tpu.memory_space<vmem>>, vector<8x128xf32>
    tpu.vector_store %arg10[%c0_23, %c0_24], %29 {strides = array<i32>} : memref<8x128xf32, #tpu.memory_space<vmem>>, vector<8x128xf32>,
    return
  }
  func.func @transform_0(%arg0: i32) -> (i32, i32) {
    %c0_i32 = arith.constant 0 : i32
    %c0_i32_0 = arith.constant 0 : i32
    return %arg0, %c0_i32 : i32, i32
  }
  func.func @transform_1(%arg0: i32) -> (i32, i32) {
    %c0_i32 = arith.constant 0 : i32
    %c0_i32_0 = arith.constant 0 : i32
    %c0_i32_1 = arith.constant 0 : i32
    return %c0_i32, %c0_i32_0 : i32, i32
  }
  func.func @transform_2(%arg0: i32) -> (i32, i32) {
    %c0_i32 = arith.constant 0 : i32
    %c0_i32_0 = arith.constant 0 : i32
    %c0_i32_1 = arith.constant 0 : i32
    return %c0_i32, %c0_i32_0 : i32, i32
  }
  func.func @transform_3(%arg0: i32) -> (i32, i32) {
    %c0_i32 = arith.constant 0 : i32
    %c0_i32_0 = arith.constant 0 : i32
    %c0_i32_1 = arith.constant 0 : i32
    return %c0_i32, %c0_i32_0 : i32, i32
  }
  func.func @transform_4(%arg0: i32) -> (i32, i32) {
    %c0_i32 = arith.constant 0 : i32
    %c0_i32_0 = arith.constant 0 : i32
    %c0_i32_1 = arith.constant 0 : i32
    return %c0_i32, %c0_i32_0 : i32, i32
  }
  func.func @transform_5(%arg0: i32) -> (i32, i32) {
    %c0_i32 = arith.constant 0 : i32
    %c0_i32_0 = arith.constant 0 : i32
    %c0_i32_1 = arith.constant 0 : i32
    return %c0_i32, %c0_i32_0 : i32, i32
  }
  func.func @transform_6(%arg0: i32) -> (i32, i32) {
    %c0_i32 = arith.constant 0 : i32
    %c0_i32_0 = arith.constant 0 : i32
    %c0_i32_1 = arith.constant 0 : i32
    return %c0_i32, %c0_i32_0 : i32, i32
  }
  func.func @transform_7(%arg0: i32) -> (i32, i32) {
    %c0_i32 = arith.constant 0 : i32
    %c0_i32_0 = arith.constant 0 : i32
    %c0_i32_1 = arith.constant 0 : i32
    return %c0_i32, %c0_i32_0 : i32, i32
  }
  func.func @transform_8(%arg0: i32) -> (i32, i32) {
    %c0_i32 = arith.constant 0 : i32
    %c0_i32_0 = arith.constant 0 : i32
    %c0_i32_1 = arith.constant 0 : i32
    return %c0_i32, %c0_i32_0 : i32, i32
  }
  func.func @transform_9(%arg0: i32) -> (i32, i32) {
    %c0_i32 = arith.constant 0 : i32
    %c0_i32_0 = arith.constant 0 : i32
    return %arg0, %c0_i32 : i32, i32
  }
}

</mosaic_0001>

<llo_original>
// kernel: tpu_custom_call.1
$region0: #{tpu_custom_call.1}
  #allocation0 [shape = 'u32[]', space=smem, size = 0x4, offset = 0x4, fixed_abs, tag = 'smem constant byte address 0x4 - core index']
  #allocation1 [shape = 'u32[72,128]{1,0:T(1,128)}', space=vmem, size = 0x9000, scoped, tag = 'internal scratch']
  %s0 = inlined_call_operand.vmem [shape: bf16[8,384], index: 0, kind: input, shape index: {}]
  %s1 = inlined_call_operand.vmem [shape: bf16[384,192], index: 1, kind: input, shape index: {}]
  %s2 = inlined_call_operand.vmem [shape: f32[1,192], index: 2, kind: input, shape index: {}]
  %s3 = inlined_call_operand.vmem [shape: bf16[192,96], index: 3, kind: input, shape index: {}]
  %s4 = inlined_call_operand.vmem [shape: f32[1,96], index: 4, kind: input, shape index: {}]
  %s5 = inlined_call_operand.vmem [shape: bf16[96,48], index: 5, kind: input, shape index: {}]
  %s6 = inlined_call_operand.vmem [shape: f32[1,48], index: 6, kind: input, shape index: {}]
  %s7 = inlined_call_operand.vmem [shape: bf16[48,128], index: 7, kind: input, shape index: {}]
  %s8 = inlined_call_operand.vmem [shape: f32[1,128], index: 8, kind: input, shape index: {}]
  %s9 = inlined_call_operand.hbm [shape: f32[8,128], index: 9, kind: output, shape index: {}]
  %s10 = sld [smem:[#allocation0]]
  $region46: #{tpu_custom_call.1} parent=0
    _
  %s12 = ssub.s32 1, %s10
  %s13 = scalar_select 0, %s12, %s10
  $region1: #{tpu_custom_call.1} parent=0
    #allocation2 [shape = 'u8[4096]{0}', space=vmem, size = 0x1000, scoped, tag = 'output window, operand 0, single buffered']
    #allocation3 [shape = 's32[1]{0}', space=sflag, size = 0x4, scoped, tag = 'scoped memory for tpu_custom_call.1']
    %14 = vsyncpa [#allocation3], 0
    // Predicated region
    $region2: #{tpu_custom_call.1} parent=1 // pred_check
      _
    $region3: #{tpu_custom_call.1} parent=1 // pred_check_branch
      %16 = sbr.rel (0) target = $region5
    $region4: #{tpu_custom_call.1} parent=1 // pred_region
      _
    $region5: #{tpu_custom_call.1} parent=1 // pred_fallthru
      _
    // Predicated region
    $region6: #{tpu_custom_call.1} parent=1 // pred_check
      _
    $region7: #{tpu_custom_call.1} parent=1 // pred_check_branch
      %18 = sbr.rel (0) target = $region9
    $region8: #{tpu_custom_call.1} parent=1 // pred_region
      _
    $region9: #{tpu_custom_call.1} parent=1 // pred_fallthru
      _
    // Predicated region
    $region10: #{tpu_custom_call.1} parent=1 // pred_check
      _
    $region11: #{tpu_custom_call.1} parent=1 // pred_check_branch
      %20 = sbr.rel (0) target = $region13
    $region12: #{tpu_custom_call.1} parent=1 // pred_region
      _
    $region13: #{tpu_custom_call.1} parent=1 // pred_fallthru
      _
    // Predicated region
    $region14: #{tpu_custom_call.1} parent=1 // pred_check
      _
    $region15: #{tpu_custom_call.1} parent=1 // pred_check_branch
      %22 = sbr.rel (0) target = $region17
    $region16: #{tpu_custom_call.1} parent=1 // pred_region
      _
    $region17: #{tpu_custom_call.1} parent=1 // pred_fallthru
      _
    // Predicated region
    $region18: #{tpu_custom_call.1} parent=1 // pred_check
      _
    $region19: #{tpu_custom_call.1} parent=1 // pred_check_branch
      %24 = sbr.rel (0) target = $region21
    $region20: #{tpu_custom_call.1} parent=1 // pred_region
      _
    $region21: #{tpu_custom_call.1} parent=1 // pred_fallthru
      _
    // Predicated region
    $region22: #{tpu_custom_call.1} parent=1 // pred_check
      _
    $region23: #{tpu_custom_call.1} parent=1 // pred_check_branch
      %26 = sbr.rel (0) target = $region25
    $region24: #{tpu_custom_call.1} parent=1 // pred_region
      _
    $region25: #{tpu_custom_call.1} parent=1 // pred_fallthru
      _
    // Predicated region
    $region26: #{tpu_custom_call.1} parent=1 // pred_check
      _
    $region27: #{tpu_custom_call.1} parent=1 // pred_check_branch
      %28 = sbr.rel (0) target = $region29
    $region28: #{tpu_custom_call.1} parent=1 // pred_region
      _
    $region29: #{tpu_custom_call.1} parent=1 // pred_fallthru
      _
    // Predicated region
    $region30: #{tpu_custom_call.1} parent=1 // pred_check
      _
    $region31: #{tpu_custom_call.1} parent=1 // pred_check_branch
      %30 = sbr.rel (0) target = $region33
    $region32: #{tpu_custom_call.1} parent=1 // pred_region
      _
    $region33: #{tpu_custom_call.1} parent=1 // pred_fallthru
      _
    // Predicated region
    $region34: #{tpu_custom_call.1} parent=1 // pred_check
      _
    $region35: #{tpu_custom_call.1} parent=1 // pred_check_branch
      %32 = sbr.rel (0) target = $region37
    $region36: #{tpu_custom_call.1} parent=1 // pred_region
      _
    $region37: #{tpu_custom_call.1} parent=1 // pred_fallthru
      _
    %v34 = vld [vmem:[%s0] sm:$0xff]
    %v35 = vld [vmem:[%s0 + $0x8] sm:$0xf]
    %v36 = vld [vmem:[%s1] sm:$0xff]
    %v37 = vld [vmem:[%s1 + $0x8] sm:$0xff]
    %v38 = vld [vmem:[%s1 + $0x10] sm:$0xff]
    %v39 = vld [vmem:[%s1 + $0x18] sm:$0xff]
    %v40 = vld [vmem:[%s1 + $0x20] sm:$0xff]
    %v41 = vld [vmem:[%s1 + $0x28] sm:$0xff]
    %v42 = vld [vmem:[%s1 + $0x30] sm:$0xff]
    %v43 = vld [vmem:[%s1 + $0x38] sm:$0xff]
    %v44 = vld [vmem:[%s1 + $0x40] sm:$0xff]
    %v45 = vld [vmem:[%s1 + $0x48] sm:$0xff]
    %v46 = vld [vmem:[%s1 + $0x50] sm:$0xff]
    %v47 = vld [vmem:[%s1 + $0x58] sm:$0xff]
    %v48 = vld [vmem:[%s1 + $0x60] sm:$0xff]
    %v49 = vld [vmem:[%s1 + $0x68] sm:$0xff]
    %v50 = vld [vmem:[%s1 + $0x70] sm:$0xff]
    %v51 = vld [vmem:[%s1 + $0x78] sm:$0xff]
    %v52 = vld [vmem:[%s1 + $0x80] sm:$0xff]
    %v53 = vld [vmem:[%s1 + $0x88] sm:$0xff]
    %v54 = vld [vmem:[%s1 + $0x90] sm:$0xff]
    %v55 = vld [vmem:[%s1 + $0x98] sm:$0xff]
    %v56 = vld [vmem:[%s1 + $0xa0] sm:$0xff]
    %v57 = vld [vmem:[%s1 + $0xa8] sm:$0xff]
    %v58 = vld [vmem:[%s1 + $0xb0] sm:$0xff]
    %v59 = vld [vmem:[%s1 + $0xb8] sm:$0xff]
    %v60 = vld [vmem:[%s1 + $0xc0] sm:$0xff]
    %v61 = vld [vmem:[%s1 + $0xc8] sm:$0xff]
    %v62 = vld [vmem:[%s1 + $0xd0] sm:$0xff]
    %v63 = vld [vmem:[%s1 + $0xd8] sm:$0xff]
    %v64 = vld [vmem:[%s1 + $0xe0] sm:$0xff]
    %v65 = vld [vmem:[%s1 + $0xe8] sm:$0xff]
    %v66 = vld [vmem:[%s1 + $0xf0] sm:$0xff]
    %v67 = vld [vmem:[%s1 + $0xf8] sm:$0xff]
    %v68 = vld [vmem:[%s1 + $0x100] sm:$0xff]
    %v69 = vld [vmem:[%s1 + $0x108] sm:$0xff]
    %v70 = vld [vmem:[%s1 + $0x110] sm:$0xff]
    %v71 = vld [vmem:[%s1 + $0x118] sm:$0xff]
    %v72 = vld [vmem:[%s1 + $0x120] sm:$0xff]
    %v73 = vld [vmem:[%s1 + $0x128] sm:$0xff]
    %v74 = vld [vmem:[%s1 + $0x130] sm:$0xff]
    %v75 = vld [vmem:[%s1 + $0x138] sm:$0xff]
    %v76 = vld [vmem:[%s1 + $0x140] sm:$0xff]
    %v77 = vld [vmem:[%s1 + $0x148] sm:$0xff]
    %v78 = vld [vmem:[%s1 + $0x150] sm:$0xff]
    %v79 = vld [vmem:[%s1 + $0x158] sm:$0xff]
    %v80 = vld [vmem:[%s1 + $0x160] sm:$0xff]
    %v81 = vld [vmem:[%s1 + $0x168] sm:$0xff]
    %v82 = vld [vmem:[%s1 + $0x170] sm:$0xff]
    %v83 = vld [vmem:[%s1 + $0x178] sm:$0xff]
    %v84 = vld [vmem:[%s2] sm:$0x3]
    %v86 = vperm.slane %v84, 0
    %v87 = vperm.slane %v84, 1
    %v92 = vunpack.c.l.b16 %v34
    %v93 = vunpack.c.h.b16 %v34
    %v94 = vunpack.c.l.b16 %v35
    %v95 = vpack.c.b16 %v92, %v92
    %v96 = vpack.c.b16 %v93, %v93
    %v97 = vpack.c.b16 %v94, %v94
    %v149 = vunpack.c.l.b16 %v36
    %v150 = vunpack.c.h.b16 %v36
    %v151 = vunpack.c.l.b16 %v37
    %v152 = vunpack.c.h.b16 %v37
    %v153 = vunpack.c.l.b16 %v38
    %v154 = vunpack.c.h.b16 %v38
    %v155 = vunpack.c.l.b16 %v39
    %v156 = vunpack.c.h.b16 %v39
    %v157 = vunpack.c.l.b16 %v40
    %v158 = vunpack.c.h.b16 %v40
    %v159 = vunpack.c.l.b16 %v41
    %v160 = vunpack.c.h.b16 %v41
    %v161 = vunpack.c.l.b16 %v42
    %v162 = vunpack.c.h.b16 %v42
    %v163 = vunpack.c.l.b16 %v43
    %v164 = vunpack.c.h.b16 %v43
    %v165 = vunpack.c.l.b16 %v44
    %v166 = vunpack.c.h.b16 %v44
    %v167 = vunpack.c.l.b16 %v45
    %v168 = vunpack.c.h.b16 %v45
    %v169 = vunpack.c.l.b16 %v46
    %v170 = vunpack.c.h.b16 %v46
    %v171 = vunpack.c.l.b16 %v47
    %v172 = vunpack.c.h.b16 %v47
    %v173 = vunpack.c.l.b16 %v48
    %v174 = vunpack.c.h.b16 %v48
    %v175 = vunpack.c.l.b16 %v49
    %v176 = vunpack.c.h.b16 %v49
    %v177 = vunpack.c.l.b16 %v50
    %v178 = vunpack.c.h.b16 %v50
    %v179 = vunpack.c.l.b16 %v51
    %v180 = vunpack.c.h.b16 %v51
    %v181 = vunpack.c.l.b16 %v52
    %v182 = vunpack.c.h.b16 %v52
    %v183 = vunpack.c.l.b16 %v53
    %v184 = vunpack.c.h.b16 %v53
    %v185 = vunpack.c.l.b16 %v54
    %v186 = vunpack.c.h.b16 %v54
    %v187 = vunpack.c.l.b16 %v55
    %v188 = vunpack.c.h.b16 %v55
    %v189 = vunpack.c.l.b16 %v56
    %v190 = vunpack.c.h.b16 %v56
    %v191 = vunpack.c.l.b16 %v57
    %v192 = vunpack.c.h.b16 %v57
    %v193 = vunpack.c.l.b16 %v58
    %v194 = vunpack.c.h.b16 %v58
    %v195 = vunpack.c.l.b16 %v59
    %v196 = vunpack.c.h.b16 %v59
    %v197 = vunpack.c.l.b16 %v60
    %v198 = vunpack.c.h.b16 %v60
    %v199 = vunpack.c.l.b16 %v61
    %v200 = vunpack.c.h.b16 %v61
    %v201 = vunpack.c.l.b16 %v62
    %v202 = vunpack.c.h.b16 %v62
    %v203 = vunpack.c.l.b16 %v63
    %v204 = vunpack.c.h.b16 %v63
    %v205 = vunpack.c.l.b16 %v64
    %v206 = vunpack.c.h.b16 %v64
    %v207 = vunpack.c.l.b16 %v65
    %v208 = vunpack.c.h.b16 %v65
    %v209 = vunpack.c.l.b16 %v66
    %v210 = vunpack.c.h.b16 %v66
    %v211 = vunpack.c.l.b16 %v67
    %v212 = vunpack.c.h.b16 %v67
    %v213 = vunpack.c.l.b16 %v68
    %v214 = vunpack.c.h.b16 %v68
    %v215 = vunpack.c.l.b16 %v69
    %v216 = vunpack.c.h.b16 %v69
    %v217 = vunpack.c.l.b16 %v70
    %v218 = vunpack.c.h.b16 %v70
    %v219 = vunpack.c.l.b16 %v71
    %v220 = vunpack.c.h.b16 %v71
    %v221 = vunpack.c.l.b16 %v72
    %v222 = vunpack.c.h.b16 %v72
    %v223 = vunpack.c.l.b16 %v73
    %v224 = vunpack.c.h.b16 %v73
    %v225 = vunpack.c.l.b16 %v74
    %v226 = vunpack.c.h.b16 %v74
    %v227 = vunpack.c.l.b16 %v75
    %v228 = vunpack.c.h.b16 %v75
    %v229 = vunpack.c.l.b16 %v76
    %v230 = vunpack.c.h.b16 %v76
    %v231 = vunpack.c.l.b16 %v77
    %v232 = vunpack.c.h.b16 %v77
    %v233 = vunpack.c.l.b16 %v78
    %v234 = vunpack.c.h.b16 %v78
    %v235 = vunpack.c.l.b16 %v79
    %v236 = vunpack.c.h.b16 %v79
    %v237 = vunpack.c.l.b16 %v80
    %v238 = vunpack.c.h.b16 %v80
    %v239 = vunpack.c.l.b16 %v81
    %v240 = vunpack.c.h.b16 %v81
    %v241 = vunpack.c.l.b16 %v82
    %v242 = vunpack.c.h.b16 %v82
    %v243 = vunpack.c.l.b16 %v83
    %v244 = vunpack.c.h.b16 %v83
    %v245 = vpack.c.b16 %v151, %v149
    %v246 = vpack.c.b16 %v152, %v150
    %v247 = vpack.c.b16 %v155, %v153
    %v248 = vpack.c.b16 %v156, %v154
    %v249 = vpack.c.b16 %v159, %v157
    %v250 = vpack.c.b16 %v160, %v158
    %v251 = vpack.c.b16 %v163, %v161
    %v252 = vpack.c.b16 %v164, %v162
    %v253 = vpack.c.b16 %v167, %v165
    %v254 = vpack.c.b16 %v168, %v166
    %v255 = vpack.c.b16 %v171, %v169
    %v256 = vpack.c.b16 %v172, %v170
    %v257 = vpack.c.b16 %v175, %v173
    %v258 = vpack.c.b16 %v176, %v174
    %v259 = vpack.c.b16 %v179, %v177
    %v260 = vpack.c.b16 %v180, %v178
    %v261 = vpack.c.b16 %v183, %v181
    %v262 = vpack.c.b16 %v184, %v182
    %v263 = vpack.c.b16 %v187, %v185
    %v264 = vpack.c.b16 %v188, %v186
    %v265 = vpack.c.b16 %v191, %v189
    %v266 = vpack.c.b16 %v192, %v190
    %v267 = vpack.c.b16 %v195, %v193
    %v268 = vpack.c.b16 %v196, %v194
    %v269 = vpack.c.b16 %v199, %v197
    %v270 = vpack.c.b16 %v200, %v198
    %v271 = vpack.c.b16 %v203, %v201
    %v272 = vpack.c.b16 %v204, %v202
    %v273 = vpack.c.b16 %v207, %v205
    %v274 = vpack.c.b16 %v208, %v206
    %v275 = vpack.c.b16 %v211, %v209
    %v276 = vpack.c.b16 %v212, %v210
    %v277 = vpack.c.b16 %v215, %v213
    %v278 = vpack.c.b16 %v216, %v214
    %v279 = vpack.c.b16 %v219, %v217
    %v280 = vpack.c.b16 %v220, %v218
    %v281 = vpack.c.b16 %v223, %v221
    %v282 = vpack.c.b16 %v224, %v222
    %v283 = vpack.c.b16 %v227, %v225
    %v284 = vpack.c.b16 %v228, %v226
    %v285 = vpack.c.b16 %v231, %v229
    %v286 = vpack.c.b16 %v232, %v230
    %v287 = vpack.c.b16 %v235, %v233
    %v288 = vpack.c.b16 %v236, %v234
    %v289 = vpack.c.b16 %v239, %v237
    %v290 = vpack.c.b16 %v240, %v238
    %v291 = vpack.c.b16 %v243, %v241
    %v292 = vpack.c.b16 %v244, %v242
    %341 = vmatpush.bf16.msra.mxu0 %v259
    %342 = vmatpush.bf16.msra.mxu0 %v257
    %343 = vmatpush.bf16.msra.mxu0 %v255
    %344 = vmatpush.bf16.msra.mxu0 %v253
    %345 = vmatpush.bf16.msra.mxu0 %v251
    %346 = vmatpush.bf16.msra.mxu0 %v249
    %347 = vmatpush.bf16.msra.mxu0 %v247
    %348 = vmatpush.bf16.msra.mxu0 %v245
    %349 = vmatmul.bf16.gmra.mxu0 %v95
    %v350 = vpop.f32.mrf.mxu0
    %v351 = vadd.f32 %v86, %v350
    %v352 = vpop.f32.mrf.mxu0
    %353 = vdwg.mxu0
    %354 = vmatpush.bf16.msra.mxu0 %v275
    %355 = vmatpush.bf16.msra.mxu0 %v273
    %356 = vmatpush.bf16.msra.mxu0 %v271
    %357 = vmatpush.bf16.msra.mxu0 %v269
    %358 = vmatpush.bf16.msra.mxu0 %v267
    %359 = vmatpush.bf16.msra.mxu0 %v265
    %360 = vmatpush.bf16.msra.mxu0 %v263
    %361 = vmatpush.bf16.msra.mxu0 %v261
    %362 = vmatmul.bf16.gmra.mxu0 %v96
    %v363 = vpop.f32.mrf.mxu0
    %v364 = vadd.f32 %v351, %v363
    %v365 = vpop.f32.mrf.mxu0
    %366 = vdwg.mxu0
    %367 = vmatpush.bf16.msra.mxu0 %v291
    %368 = vmatpush.bf16.msra.mxu0 %v289
    %369 = vmatpush.bf16.msra.mxu0 %v287
    %370 = vmatpush.bf16.msra.mxu0 %v285
    %371 = vmatpush.bf16.msra.mxu0 %v283
    %372 = vmatpush.bf16.msra.mxu0 %v281
    %373 = vmatpush.bf16.msra.mxu0 %v279
    %374 = vmatpush.bf16.msra.mxu0 %v277
    %375 = vmatmul.bf16.gmra.mxu0 %v97
    %v376 = vpop.f32.mrf.mxu0
    %v377 = vadd.f32 %v364, %v376
    %v378 = vpop.f32.mrf.mxu0
    %379 = vdwg.mxu0
    %380 = vmatpush.bf16.msra.mxu0 %v260
    %381 = vmatpush.bf16.msra.mxu0 %v258
    %382 = vmatpush.bf16.msra.mxu0 %v256
    %383 = vmatpush.bf16.msra.mxu0 %v254
    %384 = vmatpush.bf16.msra.mxu0 %v252
    %385 = vmatpush.bf16.msra.mxu0 %v250
    %386 = vmatpush.bf16.msra.mxu0 %v248
    %387 = vmatpush.bf16.msra.mxu0 %v246
    %388 = vmatmul.bf16.gmra.mxu0 %v95
    %v389 = vpop.f32.mrf.mxu0
    %v390 = vadd.f32 %v87, %v389
    %v391 = vpop.f32.mrf.mxu0
    %392 = vdwg.mxu0
    %393 = vmatpush.bf16.msra.mxu0 %v276
    %394 = vmatpush.bf16.msra.mxu0 %v274
    %395 = vmatpush.bf16.msra.mxu0 %v272
    %396 = vmatpush.bf16.msra.mxu0 %v270
    %397 = vmatpush.bf16.msra.mxu0 %v268
    %398 = vmatpush.bf16.msra.mxu0 %v266
    %399 = vmatpush.bf16.msra.mxu0 %v264
    %400 = vmatpush.bf16.msra.mxu0 %v262
    %401 = vmatmul.bf16.gmra.mxu0 %v96
    %v402 = vpop.f32.mrf.mxu0
    %v403 = vadd.f32 %v390, %v402
    %v404 = vpop.f32.mrf.mxu0
    %405 = vdwg.mxu0
    %406 = vmatpush.bf16.msra.mxu0 %v292
    %407 = vmatpush.bf16.msra.mxu0 %v290
    %408 = vmatpush.bf16.msra.mxu0 %v288
    %409 = vmatpush.bf16.msra.mxu0 %v286
    %410 = vmatpush.bf16.msra.mxu0 %v284
    %411 = vmatpush.bf16.msra.mxu0 %v282
    %412 = vmatpush.bf16.msra.mxu0 %v280
    %413 = vmatpush.bf16.msra.mxu0 %v278
    %414 = vmatmul.bf16.gmra.mxu0 %v97
    %v415 = vpop.f32.mrf.mxu0
    %v416 = vadd.f32 %v403, %v415
    %v417 = vpop.f32.mrf.mxu0
    %418 = vdwg.mxu0
    %v419 = vmax.f32 %v377, 0.0
    %v420 = vmax.f32 %v416, 0.0
    %v421 = vpack.c.bf16 %v419, %v419
    %v422 = vpack.c.bf16 %v420, %v420
    %v423 = vld [vmem:[%s3] sm:$0xf]
    %v424 = vld [vmem:[%s3 + $0x4] sm:$0xf]
    %v425 = vld [vmem:[%s3 + $0x8] sm:$0xf]
    %v426 = vld [vmem:[%s3 + $0xc] sm:$0xf]
    %v427 = vld [vmem:[%s3 + $0x10] sm:$0xf]
    %v428 = vld [vmem:[%s3 + $0x14] sm:$0xf]
    %v429 = vld [vmem:[%s3 + $0x18] sm:$0xf]
    %v430 = vld [vmem:[%s3 + $0x1c] sm:$0xf]
    %v431 = vld [vmem:[%s3 + $0x20] sm:$0xf]
    %v432 = vld [vmem:[%s3 + $0x24] sm:$0xf]
    %v433 = vld [vmem:[%s3 + $0x28] sm:$0xf]
    %v434 = vld [vmem:[%s3 + $0x2c] sm:$0xf]
    %v435 = vld [vmem:[%s3 + $0x30] sm:$0xf]
    %v436 = vld [vmem:[%s3 + $0x34] sm:$0xf]
    %v437 = vld [vmem:[%s3 + $0x38] sm:$0xf]
    %v438 = vld [vmem:[%s3 + $0x3c] sm:$0xf]
    %v439 = vld [vmem:[%s3 + $0x40] sm:$0xf]
    %v440 = vld [vmem:[%s3 + $0x44] sm:$0xf]
    %v441 = vld [vmem:[%s3 + $0x48] sm:$0xf]
    %v442 = vld [vmem:[%s3 + $0x4c] sm:$0xf]
    %v443 = vld [vmem:[%s3 + $0x50] sm:$0xf]
    %v444 = vld [vmem:[%s3 + $0x54] sm:$0xf]
    %v445 = vld [vmem:[%s3 + $0x58] sm:$0xf]
    %v446 = vld [vmem:[%s3 + $0x5c] sm:$0xf]
    %v447 = vld [vmem:[%s4] sm:$0x1]
    %v449 = vperm.slane %v447, 0
    %v475 = vunpack.c.l.b16 %v423
    %v476 = vunpack.c.l.b16 %v424
    %v477 = vunpack.c.l.b16 %v425
    %v478 = vunpack.c.l.b16 %v426
    %v479 = vunpack.c.l.b16 %v427
    %v480 = vunpack.c.l.b16 %v428
    %v481 = vunpack.c.l.b16 %v429
    %v482 = vunpack.c.l.b16 %v430
    %v483 = vunpack.c.l.b16 %v431
    %v484 = vunpack.c.l.b16 %v432
    %v485 = vunpack.c.l.b16 %v433
    %v486 = vunpack.c.l.b16 %v434
    %v487 = vunpack.c.l.b16 %v435
    %v488 = vunpack.c.l.b16 %v436
    %v489 = vunpack.c.l.b16 %v437
    %v490 = vunpack.c.l.b16 %v438
    %v491 = vunpack.c.l.b16 %v439
    %v492 = vunpack.c.l.b16 %v440
    %v493 = vunpack.c.l.b16 %v441
    %v494 = vunpack.c.l.b16 %v442
    %v495 = vunpack.c.l.b16 %v443
    %v496 = vunpack.c.l.b16 %v444
    %v497 = vunpack.c.l.b16 %v445
    %v498 = vunpack.c.l.b16 %v446
    %v499 = vpack.c.b16 %v476, %v475
    %v500 = vpack.c.b16 %v478, %v477
    %v501 = vpack.c.b16 %v480, %v479
    %v502 = vpack.c.b16 %v482, %v481
    %v503 = vpack.c.b16 %v484, %v483
    %v504 = vpack.c.b16 %v486, %v485
    %v505 = vpack.c.b16 %v488, %v487
    %v506 = vpack.c.b16 %v490, %v489
    %v507 = vpack.c.b16 %v492, %v491
    %v508 = vpack.c.b16 %v494, %v493
    %v509 = vpack.c.b16 %v496, %v495
    %v510 = vpack.c.b16 %v498, %v497
    %vm523 = vcmask 523264
    %v525 = vsel %vm523, %v422, 0
    %527 = vmatpush.bf16.msra.mxu0 %v506
    %528 = vmatpush.bf16.msra.mxu0 %v505
    %529 = vmatpush.bf16.msra.mxu0 %v504
    %530 = vmatpush.bf16.msra.mxu0 %v503
    %531 = vmatpush.bf16.msra.mxu0 %v502
    %532 = vmatpush.bf16.msra.mxu0 %v501
    %533 = vmatpush.bf16.msra.mxu0 %v500
    %534 = vmatpush.bf16.msra.mxu0 %v499
    %535 = vmatmul.bf16.gmra.mxu0 %v421
    %v536 = vpop.f32.mrf.mxu0
    %v537 = vadd.f32 %v449, %v536
    %v538 = vpop.f32.mrf.mxu0
    %539 = vdwg.mxu0
    %540 = vmatpush.bf16.msra.mxu0 0
    %541 = vmatpush.bf16.msra.mxu0 0
    %542 = vmatpush.bf16.msra.mxu0 0
    %543 = vmatpush.bf16.msra.mxu0 0
    %544 = vmatpush.bf16.msra.mxu0 %v510
    %545 = vmatpush.bf16.msra.mxu0 %v509
    %546 = vmatpush.bf16.msra.mxu0 %v508
    %547 = vmatpush.bf16.msra.mxu0 %v507
    %548 = vmatmul.bf16.gmra.mxu0 %v525
    %v549 = vpop.f32.mrf.mxu0
    %v550 = vadd.f32 %v537, %v549
    %v551 = vpop.f32.mrf.mxu0
    %552 = vdwg.mxu0
    %v553 = vmax.f32 %v550, 0.0
    %v554 = vpack.c.bf16 %v553, %v553
    %v555 = vld [vmem:[%s5] sm:$0xf]
    %v556 = vld [vmem:[%s5 + $0x4] sm:$0xf]
    %v557 = vld [vmem:[%s5 + $0x8] sm:$0xf]
    %v558 = vld [vmem:[%s5 + $0xc] sm:$0xf]
    %v559 = vld [vmem:[%s5 + $0x10] sm:$0xf]
    %v560 = vld [vmem:[%s5 + $0x14] sm:$0xf]
    %v561 = vld [vmem:[%s5 + $0x18] sm:$0xf]
    %v562 = vld [vmem:[%s5 + $0x1c] sm:$0xf]
    %v563 = vld [vmem:[%s5 + $0x20] sm:$0xf]
    %v564 = vld [vmem:[%s5 + $0x24] sm:$0xf]
    %v565 = vld [vmem:[%s5 + $0x28] sm:$0xf]
    %v566 = vld [vmem:[%s5 + $0x2c] sm:$0xf]
    %v567 = vld [vmem:[%s6] sm:$0x1]
    %v569 = vperm.slane %v567, 0
    %v583 = vunpack.c.l.b16 %v555
    %v584 = vunpack.c.l.b16 %v556
    %v585 = vunpack.c.l.b16 %v557
    %v586 = vunpack.c.l.b16 %v558
    %v587 = vunpack.c.l.b16 %v559
    %v588 = vunpack.c.l.b16 %v560
    %v589 = vunpack.c.l.b16 %v561
    %v590 = vunpack.c.l.b16 %v562
    %v591 = vunpack.c.l.b16 %v563
    %v592 = vunpack.c.l.b16 %v564
    %v593 = vunpack.c.l.b16 %v565
    %v594 = vunpack.c.l.b16 %v566
    %v595 = vpack.c.b16 %v584, %v583
    %v596 = vpack.c.b16 %v586, %v585
    %v597 = vpack.c.b16 %v588, %v587
    %v598 = vpack.c.b16 %v590, %v589
    %v599 = vpack.c.b16 %v592, %v591
    %v600 = vpack.c.b16 %v594, %v593
    %vm607 = vcmask 785408
    %v609 = vsel %vm607, %v554, 0
    %611 = vmatpush.bf16.msra.mxu0 0
    %612 = vmatpush.bf16.msra.mxu0 0
    %613 = vmatpush.bf16.msra.mxu0 %v600
    %614 = vmatpush.bf16.msra.mxu0 %v599
    %615 = vmatpush.bf16.msra.mxu0 %v598
    %616 = vmatpush.bf16.msra.mxu0 %v597
    %617 = vmatpush.bf16.msra.mxu0 %v596
    %618 = vmatpush.bf16.msra.mxu0 %v595
    %619 = vmatmul.bf16.gmra.mxu0 %v609
    %v620 = vpop.f32.mrf.mxu0
    %v621 = vadd.f32 %v569, %v620
    %v622 = vpop.f32.mrf.mxu0
    %623 = vdwg.mxu0
    %v624 = vmax.f32 %v621, 0.0
    %v625 = vpack.c.bf16 %v624, %v624
    %v626 = vld [vmem:[%s7] sm:$0xf]
    %v627 = vld [vmem:[%s7 + $0x4] sm:$0xf]
    %v628 = vld [vmem:[%s7 + $0x8] sm:$0xf]
    %v629 = vld [vmem:[%s7 + $0xc] sm:$0xf]
    %v630 = vld [vmem:[%s7 + $0x10] sm:$0xf]
    %v631 = vld [vmem:[%s7 + $0x14] sm:$0xf]
    %v632 = vld [vmem:[%s8] sm:$0x1]
    %v634 = vperm.slane %v632, 0
    %v642 = vunpack.c.l.b16 %v626
    %v643 = vunpack.c.l.b16 %v627
    %v644 = vunpack.c.l.b16 %v628
    %v645 = vunpack.c.l.b16 %v629
    %v646 = vunpack.c.l.b16 %v630
    %v647 = vunpack.c.l.b16 %v631
    %v648 = vpack.c.b16 %v643, %v642
    %v649 = vpack.c.b16 %v645, %v644
    %v650 = vpack.c.b16 %v647, %v646
    %vm654 = vcmask 392192
    %v656 = vsel %vm654, %v625, 0
    %658 = vmatpush.bf16.msra.mxu0 0
    %659 = vmatpush.bf16.msra.mxu0 0
    %660 = vmatpush.bf16.msra.mxu0 0
    %661 = vmatpush.bf16.msra.mxu0 0
    %662 = vmatpush.bf16.msra.mxu0 0
    %663 = vmatpush.bf16.msra.mxu0 %v650
    %664 = vmatpush.bf16.msra.mxu0 %v649
    %665 = vmatpush.bf16.msra.mxu0 %v648
    %666 = vmatmul.bf16.gmra.mxu0 %v656
    %v667 = vpop.f32.mrf.mxu0
    %v668 = vadd.f32 %v634, %v667
    %v669 = vpop.f32.mrf.mxu0
    %670 = vdwg.mxu0
    %671 = vst [vmem:[#allocation2] sm:$0xff] %v668
    // Predicated region
    $region38: #{tpu_custom_call.1} parent=1 // pred_check
      _
    $region39: #{tpu_custom_call.1} parent=1 // pred_check_branch
      %673 = sbr.rel (0) target = $region41
    $region40: #{tpu_custom_call.1} parent=1 // pred_region
      %675 = vsyncadd [#allocation3], 0
      %s677 = sshll.u32 [#allocation2], 4
      %s678 = int_to_ptr.vmem [resolvable:$true] %s677
      %s679 = sshll.u32 %s9, 4
      %s680 = int_to_ptr.hbm [resolvable:$true] %s679
      %682 = dma.vmem_to_hbm [thread:$0]  %s678, 128, %s680, [#allocation3]
    $region41: #{tpu_custom_call.1} parent=1 // pred_fallthru
      _
    // Predicated region
    $region42: #{tpu_custom_call.1} parent=1 // pred_check
      _
    $region43: #{tpu_custom_call.1} parent=1 // pred_check_branch
      %684 = sbr.rel (0) target = $region45
    $region44: #{tpu_custom_call.1} parent=1 // pred_region
      %686 = dma.done [#allocation3], 128
    $region45: #{tpu_custom_call.1} parent=1 // pred_fallthru
      _
    %687 = vsyncpa [#allocation3], 1

</llo_original>
